<compile_context>
chip_gen: v5e
topology: v5e:2x2
jax: 0.10.0
libtpu: 0.0.40
codegen_flags: <defaults>
</compile_context>

<pallas_src>
import functools

import numpy as np
import jax
import jax.numpy as jnp
from jax import lax
from jax.experimental import pallas as pl
from jax.experimental.pallas import tpu as pltpu

# ---------------------------------------------------------------------------
# Deterministic "module __init__" configuration (synthetic, no checkpoint).
# ---------------------------------------------------------------------------
LAMBDA_COEFF = 0.05
TUPLES = ((0, 4), (4, 7), (7, 12))          # grouped (categorical) columns
FUNCTION_DICT = {"name": "exp", "beta": 2.0, "gamma": 0.1}
TASK_WEIGHTS = (1.0, 2.0)                   # class weights w0 (pos), w1 (neg)
TASK = "Classification"
EPS = float(np.finfo(np.float32).eps)       # torch.finfo(torch.float32).eps

OUT_FEATURES = 32                           # model.layers[0] hidden units
IN_FEATURES = 20                            # model.layers[0] input features
BATCH = 200                                 # arbitrary; wrapper pads + masks

LANES = 128
SUBLANES = 8


# ---------------------------------------------------------------------------
# Penalty function (traced inside the kernel, vectorized over a (NPAD, 1) col).
# ---------------------------------------------------------------------------
def _penalty_fn(x):
    name = FUNCTION_DICT["name"]
    if name == "linear":
        return x
    if name == "exp":
        beta, gamma = FUNCTION_DICT["beta"], FUNCTION_DICT["gamma"]
        return 1.0 - jnp.exp(-(x * x) / beta) + gamma * jnp.abs(x)
    if name == "tanh":
        beta, gamma = FUNCTION_DICT["beta"], FUNCTION_DICT["gamma"]
        return jnp.tanh(x / beta) + gamma * x
    if name == "quadratic":
        alpha = FUNCTION_DICT["alpha"]
        return jnp.where(jnp.abs(x) >= alpha, x, x * x / (2 * alpha) + alpha / 2)
    raise ValueError("Function not available.")


# ---------------------------------------------------------------------------
# In-kernel constant construction: group-mean aggregation matrix + term mask,
# built from iota/select so no constant DMA / captured-const input is needed.
#   agg[j, i] = 1/(hi-lo) for group row j covering column i,
#               1         for the continuous passthrough rows,
#               0         otherwise (incl. padded rows).
# ---------------------------------------------------------------------------
def _build_agg_and_mask(n_terms_pad, in_features):
    n_groups = len(TUPLES)
    cont_start = TUPLES[-1][-1]
    n_terms = n_groups + (in_features - cont_start)

    row = lax.broadcasted_iota(jnp.int32, (n_terms_pad, in_features), 0)
    col = lax.broadcasted_iota(jnp.int32, (n_terms_pad, in_features), 1)

    agg = jnp.zeros((n_terms_pad, in_features), jnp.float32)
    for g, (lo, hi) in enumerate(TUPLES):
        sel = (row == g) & (col >= lo) & (col < hi)
        agg = jnp.where(sel, jnp.float32(1.0 / (hi - lo)), agg)
    sel_cont = ((row >= n_groups) & (row < n_terms)
                & ((col - cont_start) == (row - n_groups)))
    agg = jnp.where(sel_cont, jnp.float32(1.0), agg)

    trow = lax.broadcasted_iota(jnp.int32, (n_terms_pad, 1), 0)
    tmask = (trow < n_terms).astype(jnp.float32)   # kill f(0) of padded rows
    return agg, tmask


# ---------------------------------------------------------------------------
# Fused kernel: weighted-BCE mean + grouped-lasso penalty -> (1,1) SMEM scalar.
# ---------------------------------------------------------------------------
def _gl_penalty_kernel(p_ref, y_ref, w_ref, n_ref, loss_ref, *, n_terms_pad):
    rows, lanes = p_ref.shape
    n = n_ref[0]                                   # live batch size (SMEM)
    n_f = n.astype(jnp.float32)

    # valid-batch mask, generated in-kernel (no extra input plane / DMA)
    idx = (lax.broadcasted_iota(jnp.int32, (rows, lanes), 0) * lanes
           + lax.broadcasted_iota(jnp.int32, (rows, lanes), 1))
    valid = idx < n

    p = p_ref[...]
    y = y_ref[...]
    eps = jnp.float32(EPS)
    if TASK == "Classification":
        p_c = jnp.clip(p, eps, 1.0 - eps)
        q_c = jnp.clip(1.0 - p, eps, 1.0 - eps)
        task_loss = -(jnp.float32(TASK_WEIGHTS[0]) * y * jnp.log(p_c)
                      + jnp.float32(TASK_WEIGHTS[1]) * (1.0 - y) * jnp.log(q_c))
    else:  # Regression
        task_loss = (y - p) ** 2

    # masked mean over the live batch (padded lanes contribute exactly 0)
    task_sum = jnp.sum(jnp.where(valid, task_loss, 0.0), keepdims=True)  # (1,1)
    task_mean = task_sum / n_f

    if LAMBDA_COEFF > 0:
        w = w_ref[...]                                            # (OUT, IN)
        # per-input-column L2 norms as a lane row (sublane reduce, no transpose)
        norms = jnp.sqrt(jnp.sum(w * w, axis=0, keepdims=True))   # (1, IN)
        agg, tmask = _build_agg_and_mask(n_terms_pad, w.shape[1])
        # terms[j] = sum_i agg[j, i] * norms[i]  (VPU mul + lane reduce, exact f32)
        terms = jnp.sum(agg * norms, axis=1, keepdims=True)       # (NPAD, 1)
        pen = jnp.sum(_penalty_fn(terms) * tmask, keepdims=True)  # (1, 1)
        out = task_mean + jnp.float32(LAMBDA_COEFF) * pen
    else:
        out = task_mean

    loss_ref[0, 0] = jnp.sum(out)                  # scalar store to SMEM


# ---------------------------------------------------------------------------
# Wrapper.
# ---------------------------------------------------------------------------
def grouped_lasso_penalty(p, y, first_layer_weight):
    p_flat = jnp.reshape(p, (-1,)).astype(jnp.float32)
    y_flat = jnp.reshape(y, (-1,)).astype(jnp.float32)
    batch = p_flat.shape[0]
    w = first_layer_weight.astype(jnp.float32)     # (OUT, IN) -- no transpose
    out_features, in_features = w.shape

    padded = ((batch + LANES - 1) // LANES) * LANES
    rows = padded // LANES
    pad = padded - batch
    p_rows = jnp.pad(p_flat, (0, pad)).reshape(rows, LANES)
    y_rows = jnp.pad(y_flat, (0, pad)).reshape(rows, LANES)

    n_groups = len(TUPLES)
    n_terms = n_groups + (in_features - TUPLES[-1][-1])
    n_terms_pad = max(SUBLANES, ((n_terms + SUBLANES - 1) // SUBLANES) * SUBLANES)

    n_arr = jnp.asarray([batch], dtype=jnp.int32)  # runtime live-batch scalar

    cost = pl.CostEstimate(
        flops=12 * padded + 6 * out_features * in_features + 4 * n_terms_pad * in_features,
        transcendentals=2 * padded + in_features + n_terms_pad,
        bytes_accessed=(2 * padded + out_features * in_features) * 4 + 4 + 4,
    )

    kernel = functools.partial(_gl_penalty_kernel, n_terms_pad=n_terms_pad)
    loss = pl.pallas_call(
        kernel,
        out_shape=jax.ShapeDtypeStruct((1, 1), jnp.float32),
        in_specs=[
            pl.BlockSpec(memory_space=pltpu.MemorySpace.VMEM),   # p (rows, 128)
            pl.BlockSpec(memory_space=pltpu.MemorySpace.VMEM),   # y (rows, 128)
            pl.BlockSpec(memory_space=pltpu.MemorySpace.VMEM),   # W (OUT, IN)
            pl.BlockSpec(memory_space=pltpu.MemorySpace.SMEM),   # live batch
        ],
        out_specs=pl.BlockSpec(memory_space=pltpu.MemorySpace.SMEM),
        cost_estimate=cost,
    )(p_rows, y_rows, w, n_arr)
    return loss[0, 0]


# ---------------------------------------------------------------------------
# Pure-JAX reference (matches the torch module semantics).
# ---------------------------------------------------------------------------
def _reference(p, y, w):
    p = p.reshape(-1, 1).astype(jnp.float32)
    y = y.reshape(-1, 1).astype(jnp.float32)
    w = w.astype(jnp.float32)
    eps = jnp.float32(EPS)
    if TASK == "Classification":
        tl = -(TASK_WEIGHTS[0] * y * jnp.log(jnp.clip(p, eps, 1 - eps))
               + TASK_WEIGHTS[1] * (1 - y) * jnp.log(jnp.clip(1 - p, eps, 1 - eps)))
    else:
        tl = (y - p) ** 2
    avg = jnp.mean(tl)
    norms = jnp.sqrt(jnp.sum(w * w, axis=0))
    pen = jnp.float32(0.0)
    for tup in TUPLES:
        pen = pen + _penalty_fn(jnp.sum(norms[tup[0]:tup[1]]) / (tup[1] - tup[0]))
    for i in range(TUPLES[-1][-1], w.shape[1]):
        pen = pen + _penalty_fn(norms[i])
    if LAMBDA_COEFF > 0:
        return avg + pen * LAMBDA_COEFF
    return avg


if __name__ == "__main__":
    key = jax.random.PRNGKey(0)
    k_p, k_y, k_w = jax.random.split(key, 3)

    # predictions in (0, 1), binary targets, deterministic first-layer weight
    p = jax.nn.sigmoid(jax.random.normal(k_p, (BATCH, 1), dtype=jnp.float32))
    y = (jax.random.uniform(k_y, (BATCH, 1)) > 0.5).astype(jnp.float32)
    first_layer_weight = 0.1 * jax.random.normal(
        k_w, (OUT_FEATURES, IN_FEATURES), dtype=jnp.float32)

    loss_fn = jax.jit(grouped_lasso_penalty)
    loss = jax.block_until_ready(loss_fn(p, y, first_layer_weight))

    ref = jax.block_until_ready(_reference(p, y, first_layer_weight))
    np.testing.assert_allclose(np.asarray(loss), np.asarray(ref),
                               rtol=1e-5, atol=1e-6)
    print("KERNEL_OK")
</pallas_src>

<mosaic_0001>
module attributes {stable_mosaic.version = 11 : i64} {
  func.func @_gl_penalty_kernel(%arg0: memref<2x128xf32, #tpu.memory_space<vmem>>, %arg1: memref<2x128xf32, #tpu.memory_space<vmem>>, %arg2: memref<32x20xf32, #tpu.memory_space<vmem>>, %arg3: memref<1xi32, #tpu.memory_space<smem>>, %arg4: memref<1x1xf32, #tpu.memory_space<smem>>) attributes {dimension_semantics = [], scalar_prefetch = 0 : i64, scratch_operands = 0 : i64, tpu.core_type = #tpu.core_type<tc>} {
    %c0 = arith.constant 0 : index
    %0 = memref.load %arg3[%c0] : memref<1xi32, #tpu.memory_space<smem>>
    %1 = arith.sitofp %0 : i32 to f32
    %2 = tpu.iota {dimensions = array<i32: 0>} : vector<2x128xi32>
    %c128_i32 = arith.constant 128 : i32
    %3 = vector.broadcast %c128_i32 : i32 to vector<2x128xi32>
    %4 = arith.muli %2, %3 : vector<2x128xi32>
    %5 = tpu.iota {dimensions = array<i32: 1>} : vector<2x128xi32>
    %6 = arith.addi %4, %5 : vector<2x128xi32>
    %7 = vector.broadcast %0 : i32 to vector<2x128xi32>
    %8 = arith.cmpi slt, %6, %7 : vector<2x128xi32>
    %c0_0 = arith.constant 0 : index
    %c0_1 = arith.constant 0 : index
    %9 = vector.load %arg0[%c0_0, %c0_1] : memref<2x128xf32, #tpu.memory_space<vmem>>, vector<2x128xf32>
    %c0_2 = arith.constant 0 : index
    %c0_3 = arith.constant 0 : index
    %10 = vector.load %arg1[%c0_2, %c0_3] : memref<2x128xf32, #tpu.memory_space<vmem>>, vector<2x128xf32>
    %cst = arith.constant 1.000000e+00 : f32
    %cst_4 = arith.constant 1.1920929E-7 : f32
    %11 = arith.subf %cst, %cst_4 : f32
    %cst_5 = arith.constant 1.1920929E-7 : f32
    %12 = vector.broadcast %cst_5 : f32 to vector<2x128xf32>
    %13 = arith.maximumf %12, %9 : vector<2x128xf32>
    %14 = vector.broadcast %11 : f32 to vector<2x128xf32>
    %15 = arith.minimumf %14, %13 : vector<2x128xf32>
    %cst_6 = arith.constant 1.000000e+00 : f32
    %16 = vector.broadcast %cst_6 : f32 to vector<2x128xf32>
    %17 = arith.subf %16, %9 : vector<2x128xf32>
    %cst_7 = arith.constant 1.000000e+00 : f32
    %cst_8 = arith.constant 1.1920929E-7 : f32
    %18 = arith.subf %cst_7, %cst_8 : f32
    %cst_9 = arith.constant 1.1920929E-7 : f32
    %19 = vector.broadcast %cst_9 : f32 to vector<2x128xf32>
    %20 = arith.maximumf %19, %17 : vector<2x128xf32>
    %21 = vector.broadcast %18 : f32 to vector<2x128xf32>
    %22 = arith.minimumf %21, %20 : vector<2x128xf32>
    %cst_10 = arith.constant 1.000000e+00 : f32
    %23 = vector.broadcast %cst_10 : f32 to vector<2x128xf32>
    %24 = arith.mulf %23, %10 : vector<2x128xf32>
    %25 = math.log %15 : vector<2x128xf32>
    %26 = arith.mulf %24, %25 : vector<2x128xf32>
    %cst_11 = arith.constant 1.000000e+00 : f32
    %27 = vector.broadcast %cst_11 : f32 to vector<2x128xf32>
    %28 = arith.subf %27, %10 : vector<2x128xf32>
    %cst_12 = arith.constant 2.000000e+00 : f32
    %29 = vector.broadcast %cst_12 : f32 to vector<2x128xf32>
    %30 = arith.mulf %29, %28 : vector<2x128xf32>
    %31 = math.log %22 : vector<2x128xf32>
    %32 = arith.mulf %30, %31 : vector<2x128xf32>
    %33 = arith.addf %26, %32 : vector<2x128xf32>
    %cst_13 = arith.constant 0.000000e+00 : f32
    %34 = vector.broadcast %cst_13 : f32 to vector<2x128xf32>
    %35 = arith.subf %34, %33 : vector<2x128xf32>
    %cst_14 = arith.constant 0.000000e+00 : f32
    %36 = vector.broadcast %cst_14 : f32 to vector<2x128xf32>
    %37 = arith.select %8, %35, %36 : vector<2x128xi1>, vector<2x128xf32>
    %38 = vector.shape_cast %37 : vector<2x128xf32> to vector<1x2x128xf32>
    %cst_15 = arith.constant dense<0.000000e+00> : vector<1xf32>
    %39 = vector.multi_reduction <add>, %38, %cst_15 [1, 2] : vector<1x2x128xf32> to vector<1xf32>
    %40 = vector.shape_cast %39 : vector<1xf32> to vector<1x1x1xf32>
    %41 = vector.extract %40[0, 0, 0] : f32 from vector<1x1x1xf32>
    %42 = vector.broadcast %41 : f32 to vector<1x1xf32>
    %43 = vector.broadcast %1 : f32 to vector<1x1xf32>
    %44 = arith.divf %42, %43 : vector<1x1xf32>
    %c0_16 = arith.constant 0 : index
    %c0_17 = arith.constant 0 : index
    %45 = vector.load %arg2[%c0_16, %c0_17] : memref<32x20xf32, #tpu.memory_space<vmem>>, vector<32x20xf32>
    %46 = arith.mulf %45, %45 : vector<32x20xf32>
    %cst_18 = arith.constant dense<0.000000e+00> : vector<20xf32>
    %47 = vector.multi_reduction <add>, %46, %cst_18 [0] : vector<32x20xf32> to vector<20xf32>
    %48 = vector.shape_cast %47 : vector<20xf32> to vector<1x20xf32>
    %49 = math.sqrt %48 : vector<1x20xf32>
    %50 = tpu.iota {dimensions = array<i32: 0>} : vector<16x20xi32>
    %51 = tpu.iota {dimensions = array<i32: 1>} : vector<16x20xi32>
    %cst_19 = arith.constant 0.000000e+00 : f32
    %52 = vector.broadcast %cst_19 : f32 to vector<16x20xf32>
    %c0_i32 = arith.constant 0 : i32
    %53 = vector.broadcast %c0_i32 : i32 to vector<16x20xi32>
    %54 = arith.cmpi eq, %50, %53 : vector<16x20xi32>
    %c0_i32_20 = arith.constant 0 : i32
    %55 = vector.broadcast %c0_i32_20 : i32 to vector<16x20xi32>
    %56 = arith.cmpi sge, %51, %55 : vector<16x20xi32>
    %57 = arith.andi %54, %56 : vector<16x20xi1>
    %c4_i32 = arith.constant 4 : i32
    %58 = vector.broadcast %c4_i32 : i32 to vector<16x20xi32>
    %59 = arith.cmpi slt, %51, %58 : vector<16x20xi32>
    %60 = arith.andi %57, %59 : vector<16x20xi1>
    %cst_21 = arith.constant 2.500000e-01 : f32
    %61 = vector.broadcast %cst_21 : f32 to vector<16x20xf32>
    %62 = arith.select %60, %61, %52 : vector<16x20xi1>, vector<16x20xf32>
    %c1_i32 = arith.constant 1 : i32
    %63 = vector.broadcast %c1_i32 : i32 to vector<16x20xi32>
    %64 = arith.cmpi eq, %50, %63 : vector<16x20xi32>
    %c4_i32_22 = arith.constant 4 : i32
    %65 = vector.broadcast %c4_i32_22 : i32 to vector<16x20xi32>
    %66 = arith.cmpi sge, %51, %65 : vector<16x20xi32>
    %67 = arith.andi %64, %66 : vector<16x20xi1>
    %c7_i32 = arith.constant 7 : i32
    %68 = vector.broadcast %c7_i32 : i32 to vector<16x20xi32>
    %69 = arith.cmpi slt, %51, %68 : vector<16x20xi32>
    %70 = arith.andi %67, %69 : vector<16x20xi1>
    %cst_23 = arith.constant 0.333333343 : f32
    %71 = vector.broadcast %cst_23 : f32 to vector<16x20xf32>
    %72 = arith.select %70, %71, %62 : vector<16x20xi1>, vector<16x20xf32>
    %c2_i32 = arith.constant 2 : i32
    %73 = vector.broadcast %c2_i32 : i32 to vector<16x20xi32>
    %74 = arith.cmpi eq, %50, %73 : vector<16x20xi32>
    %c7_i32_24 = arith.constant 7 : i32
    %75 = vector.broadcast %c7_i32_24 : i32 to vector<16x20xi32>
    %76 = arith.cmpi sge, %51, %75 : vector<16x20xi32>
    %77 = arith.andi %74, %76 : vector<16x20xi1>
    %c12_i32 = arith.constant 12 : i32
    %78 = vector.broadcast %c12_i32 : i32 to vector<16x20xi32>
    %79 = arith.cmpi slt, %51, %78 : vector<16x20xi32>
    %80 = arith.andi %77, %79 : vector<16x20xi1>
    %cst_25 = arith.constant 2.000000e-01 : f32
    %81 = vector.broadcast %cst_25 : f32 to vector<16x20xf32>
    %82 = arith.select %80, %81, %72 : vector<16x20xi1>, vector<16x20xf32>
    %c3_i32 = arith.constant 3 : i32
    %83 = vector.broadcast %c3_i32 : i32 to vector<16x20xi32>
    %84 = arith.cmpi sge, %50, %83 : vector<16x20xi32>
    %c11_i32 = arith.constant 11 : i32
    %85 = vector.broadcast %c11_i32 : i32 to vector<16x20xi32>
    %86 = arith.cmpi slt, %50, %85 : vector<16x20xi32>
    %87 = arith.andi %84, %86 : vector<16x20xi1>
    %c12_i32_26 = arith.constant 12 : i32
    %88 = vector.broadcast %c12_i32_26 : i32 to vector<16x20xi32>
    %89 = arith.subi %51, %88 : vector<16x20xi32>
    %c3_i32_27 = arith.constant 3 : i32
    %90 = vector.broadcast %c3_i32_27 : i32 to vector<16x20xi32>
    %91 = arith.subi %50, %90 : vector<16x20xi32>
    %92 = arith.cmpi eq, %89, %91 : vector<16x20xi32>
    %93 = arith.andi %87, %92 : vector<16x20xi1>
    %cst_28 = arith.constant 1.000000e+00 : f32
    %94 = vector.broadcast %cst_28 : f32 to vector<16x20xf32>
    %95 = arith.select %93, %94, %82 : vector<16x20xi1>, vector<16x20xf32>
    %96 = tpu.iota {dimensions = array<i32: 0>} : vector<16x1xi32>
    %c11_i32_29 = arith.constant 11 : i32
    %97 = vector.broadcast %c11_i32_29 : i32 to vector<16x1xi32>
    %98 = arith.cmpi slt, %96, %97 : vector<16x1xi32>
    %99 = arith.extui %98 : vector<16x1xi1> to vector<16x1xi32>
    %100 = arith.sitofp %99 : vector<16x1xi32> to vector<16x1xf32>
    %101 = vector.broadcast %49 : vector<1x20xf32> to vector<16x20xf32>
    %102 = arith.mulf %95, %101 : vector<16x20xf32>
    %cst_30 = arith.constant dense<0.000000e+00> : vector<16xf32>
    %103 = vector.multi_reduction <add>, %102, %cst_30 [1] : vector<16x20xf32> to vector<16xf32>
    %104 = vector.shape_cast %103 : vector<16xf32> to vector<16x1xf32>
    %105 = arith.mulf %104, %104 : vector<16x1xf32>
    %cst_31 = arith.constant 0.000000e+00 : f32
    %106 = vector.broadcast %cst_31 : f32 to vector<16x1xf32>
    %107 = arith.subf %106, %105 : vector<16x1xf32>
    %cst_32 = arith.constant 2.000000e+00 : f32
    %108 = vector.broadcast %cst_32 : f32 to vector<16x1xf32>
    %109 = arith.divf %107, %108 : vector<16x1xf32>
    %110 = math.exp %109 : vector<16x1xf32>
    %cst_33 = arith.constant 1.000000e+00 : f32
    %111 = vector.broadcast %cst_33 : f32 to vector<16x1xf32>
    %112 = arith.subf %111, %110 : vector<16x1xf32>
    %113 = math.absf %104 : vector<16x1xf32>
    %cst_34 = arith.constant 1.000000e-01 : f32
    %114 = vector.broadcast %cst_34 : f32 to vector<16x1xf32>
    %115 = arith.mulf %114, %113 : vector<16x1xf32>
    %116 = arith.addf %112, %115 : vector<16x1xf32>
    %117 = arith.mulf %116, %100 : vector<16x1xf32>
    %118 = vector.shape_cast %117 : vector<16x1xf32> to vector<1x16x1xf32>
    %cst_35 = arith.constant dense<0.000000e+00> : vector<1xf32>
    %119 = vector.multi_reduction <add>, %118, %cst_35 [1, 2] : vector<1x16x1xf32> to vector<1xf32>
    %120 = vector.shape_cast %119 : vector<1xf32> to vector<1x1x1xf32>
    %121 = vector.extract %120[0, 0, 0] : f32 from vector<1x1x1xf32>
    %122 = vector.broadcast %121 : f32 to vector<1x1xf32>
    %cst_36 = arith.constant 5.000000e-02 : f32
    %123 = vector.broadcast %cst_36 : f32 to vector<1x1xf32>
    %124 = arith.mulf %123, %122 : vector<1x1xf32>
    %125 = arith.addf %44, %124 : vector<1x1xf32>
    %126 = vector.shape_cast %125 : vector<1x1xf32> to vector<1x1x1xf32>
    %cst_37 = arith.constant dense<0.000000e+00> : vector<1xf32>
    %127 = vector.multi_reduction <add>, %126, %cst_37 [1, 2] : vector<1x1x1xf32> to vector<1xf32>
    %128 = vector.shape_cast %127 : vector<1xf32> to vector<1x1x1xf32>
    %129 = vector.extract %128[0, 0, 0] : f32 from vector<1x1x1xf32>
    %c0_38 = arith.constant 0 : index
    %c0_39 = arith.constant 0 : index
    %130 = memref.load %arg4[%c0_38, %c0_39] : memref<1x1xf32, #tpu.memory_space<smem>>
    memref.store %129, %arg4[%c0_38, %c0_39] : memref<1x1xf32, #tpu.memory_space<smem>>
    return
  }
}

</mosaic_0001>

<llo_original>
// kernel: grouped_lasso_penalty.1
$region0: #{grouped_lasso_penalty.1}
  #allocation0 [shape = 'u32[]', space=smem, size = 0x4, offset = 0x4, fixed_abs, tag = 'smem constant byte address 0x4 - core index']
  #allocation1 [shape = 'u32[72,128]{1,0:T(1,128)}', space=vmem, size = 0x9000, scoped, tag = 'internal scratch']
  #allocation2 [shape = 's32[1]{0:T(128)S(6)}', space=smem, size = 0x200, scoped, tag = 'scoped memory for grouped_lasso_penalty.1']
  %s0 = inlined_call_operand.vmem [shape: f32[2,128], index: 0, kind: input, shape index: {}]
  %s1 = inlined_call_operand.vmem [shape: f32[2,128], index: 1, kind: input, shape index: {}]
  %s2 = inlined_call_operand.vmem [shape: f32[32,20], index: 2, kind: input, shape index: {}]
  %s3 = inlined_call_operand.<no memory space> [shape: s32[1], index: 3, kind: input, shape index: {}]
  %s4 = inlined_call_operand.hbm [shape: f32[1,1], index: 4, kind: output, shape index: {}]
  %s5 = sld [smem:[#allocation0]]
  $region26: #{grouped_lasso_penalty.1} parent=0
    _
  %s7 = ssub.s32 1, %s5
  %s8 = scalar_select 0, %s7, %s5
  %9 = sst [smem:[#allocation2]] %s3
  $region1: #{grouped_lasso_penalty.1} parent=0
    #allocation3 [shape = 'u8[512]{0}', space=smem, size = 0x200, scoped, tag = 'output window, operand 0, single buffered']
    #allocation4 [shape = 's32[1]{0}', space=sflag, size = 0x4, scoped, tag = 'scoped memory for grouped_lasso_penalty.1']
    %10 = vsyncpa [#allocation4], 0
    // Predicated region
    $region2: #{grouped_lasso_penalty.1} parent=1 // pred_check
      _
    $region3: #{grouped_lasso_penalty.1} parent=1 // pred_check_branch
      %12 = sbr.rel (0) target = $region5
    $region4: #{grouped_lasso_penalty.1} parent=1 // pred_region
      _
    $region5: #{grouped_lasso_penalty.1} parent=1 // pred_fallthru
      _
    // Predicated region
    $region6: #{grouped_lasso_penalty.1} parent=1 // pred_check
      _
    $region7: #{grouped_lasso_penalty.1} parent=1 // pred_check_branch
      %14 = sbr.rel (0) target = $region9
    $region8: #{grouped_lasso_penalty.1} parent=1 // pred_region
      _
    $region9: #{grouped_lasso_penalty.1} parent=1 // pred_fallthru
      _
    // Predicated region
    $region10: #{grouped_lasso_penalty.1} parent=1 // pred_check
      _
    $region11: #{grouped_lasso_penalty.1} parent=1 // pred_check_branch
      %16 = sbr.rel (0) target = $region13
    $region12: #{grouped_lasso_penalty.1} parent=1 // pred_region
      _
    $region13: #{grouped_lasso_penalty.1} parent=1 // pred_fallthru
      _
    // Predicated region
    $region14: #{grouped_lasso_penalty.1} parent=1 // pred_check
      _
    $region15: #{grouped_lasso_penalty.1} parent=1 // pred_check_branch
      %18 = sbr.rel (0) target = $region17
    $region16: #{grouped_lasso_penalty.1} parent=1 // pred_region
      _
    $region17: #{grouped_lasso_penalty.1} parent=1 // pred_fallthru
      _
    %s19 = sld [smem:[#allocation2]]
    %s20 = scvt.s32.f32 %s19
    %v21 = vlaneseq
    %v22 = vshrl.u32 %v21, 7
    %v23 = vmul.u32 %v22, 128
    %v24 = vlaneseq
    %v25 = vand.u32 %v24, 127
    %v26 = vadd.s32 %v23, %v25
    %v27 = vstv %s19
    %vm28 = vcmp.lt.s32.totalorder %v26, %v27
    %v29 = vld [vmem:[%s0] sm:$0x3]
    %v30 = vld [vmem:[%s1] sm:$0x3]
    %v31 = vmax.f32 %v29, 1.1920929e-07
    %v32 = vmin.f32 %v31, 0.9999999
    %v33 = vsub.f32 1.0, %v29
    %v34 = vmax.f32 %v33, 1.1920929e-07
    %v35 = vmin.f32 %v34, 0.9999999
    %v36 = vlog2.pop %v32
    %v37 = vmul.f32 %v36, 0.6931472
    %v38 = vmul.f32 %v30, %v37
    %v39 = vsub.f32 1.0, %v30
    %v40 = vmul.f32 %v39, 2.0
    %v41 = vlog2.pop %v35
    %v42 = vmul.f32 %v41, 0.6931472
    %v43 = vmul.f32 %v40, %v42
    %v44 = vadd.f32 %v38, %v43
    %v45 = vsub.f32 0.0, %v44
    %v46 = vsel %vm28, %v45, 0.0
    %vm47 = vcmask 1041408
    %v48 = vsel %vm47, %v46, 0.0
    %49 = vadd.xlane.f32.xlu0 %v48
    %v50 = vpop.xlane.xlu0 %49
    %v51 = vrot.slane %v50, 4
    %v52 = vadd.f32 %v50, %v51
    %v53 = vrot.slane %v52, 2
    %v54 = vadd.f32 %v52, %v53
    %v55 = vrot.slane %v54, 1
    %v56 = vadd.f32 %v54, %v55
    %s57 = vtos %v56
    %v58 = vstv %s57
    %v59 = vstv %s20
    %v60 = vrcp.pop %v59
    %v61 = vmul.f32 %v59, %v60
    %v62 = vsub.f32 1.0, %v61
    %v63 = vmul.f32 %v60, %v62
    %v64 = vadd.f32 %v60, %v63
    %vm65 = vweird.f32 %v59
    %vm66 = vweird.f32 %v60
    %vm67 = vmor %vm65, %vm66
    %v68 = vsel %vm67, %v60, %v64
    %v69 = vand.u32 2147483647, %v59
    %vm70 = vcmp.eq.f32.partialorder %v69, 8.507059e+37
    %v71 = vand.u32 %v59, 2147483648
    %v72 = vor.u32 1.1754944e-38, %v71
    %v73 = vsel %vm70, %v72, %v68
    %v74 = vmul.f32 %v58, %v73
    %v75 = vld [vmem:[%s2] sm:$0xff]
    %v76 = vld [vmem:[%s2 + $0x8] sm:$0xff]
    %v77 = vld [vmem:[%s2 + $0x10] sm:$0xff]
    %v78 = vld [vmem:[%s2 + $0x18] sm:$0xff]
    %v79 = vmul.f32 %v75, %v75
    %v80 = vmul.f32 %v76, %v76
    %v81 = vmul.f32 %v77, %v77
    %v82 = vmul.f32 %v78, %v78
    %vm83 = vcmask 162816
    %v84 = vsel %vm83, %v79, 0.0
    %v85 = vsel %vm83, %v80, 0.0
    %v86 = vadd.f32 %v84, %v85
    %v87 = vsel %vm83, %v81, 0.0
    %v88 = vadd.f32 %v86, %v87
    %v89 = vsel %vm83, %v82, 0.0
    %v90 = vadd.f32 %v88, %v89
    %v91 = vrot.slane %v90, 4
    %v92 = vadd.f32 %v90, %v91
    %v93 = vrot.slane %v92, 2
    %v94 = vadd.f32 %v92, %v93
    %v95 = vrot.slane %v94, 1
    %v96 = vadd.f32 %v94, %v95
    %v97 = vrsqrt.pop %v96
    %v98 = vmul.f32 %v97, %v96
    %v99 = vmul.f32 %v98, %v97
    %v100 = vmul.f32 0.5, %v99
    %v101 = vsub.f32 1.5, %v100
    %v102 = vmul.f32 %v97, %v101
    %v103 = vmul.f32 %v96, %v102
    %vm104 = vcmp.eq.f32.partialorder %v96, inf
    %v105 = vsel %vm104, %v96, %v103
    %vm106 = vcmp.eq.f32.partialorder %v96, 0.0
    %v107 = vand.u32 %v96, 2147483648
    %v108 = vsel %vm106, %v107, %v105
    %v109 = vadd.s32 %v22, 8
    %vm110 = vcmp.eq.s32.totalorder %v22, 0
    %vm111 = vcmp.eq.s32.totalorder %v109, 0
    %vm112 = vcmp.ge.s32.totalorder %v25, 0
    %vm113 = vmand %vm110, %vm112
    %vm114 = vmand %vm111, %vm112
    %vm115 = vcmp.lt.s32.totalorder %v25, 4
    %vm116 = vmand %vm113, %vm115
    %vm117 = vmand %vm114, %vm115
    %v118 = vsel %vm116, 0.25, 0.0
    %v119 = vsel %vm117, 0.25, 0.0
    %vm120 = vcmp.eq.s32.totalorder %v22, 1
    %vm121 = vcmp.eq.s32.totalorder %v109, 1
    %vm122 = vcmp.ge.s32.totalorder %v25, 4
    %vm123 = vmand %vm120, %vm122
    %vm124 = vmand %vm121, %vm122
    %vm125 = vcmp.lt.s32.totalorder %v25, 7
    %vm126 = vmand %vm123, %vm125
    %vm127 = vmand %vm124, %vm125
    %v128 = vsel %vm126, 0.33333334, %v118
    %v129 = vsel %vm127, 0.33333334, %v119
    %vm130 = vcmp.eq.s32.totalorder %v22, 2
    %vm131 = vcmp.eq.s32.totalorder %v109, 2
    %vm132 = vcmp.ge.s32.totalorder %v25, 7
    %vm133 = vmand %vm130, %vm132
    %vm134 = vmand %vm131, %vm132
    %vm135 = vcmp.lt.s32.totalorder %v25, 12
    %vm136 = vmand %vm133, %vm135
    %vm137 = vmand %vm134, %vm135
    %v138 = vsel %vm136, 0.2, %v128
    %v139 = vsel %vm137, 0.2, %v129
    %vm140 = vcmp.ge.s32.totalorder %v22, 3
    %vm141 = vcmp.ge.s32.totalorder %v109, 3
    %vm142 = vcmp.lt.s32.totalorder %v22, 11
    %vm143 = vcmp.lt.s32.totalorder %v109, 11
    %vm144 = vmand %vm140, %vm142
    %vm145 = vmand %vm141, %vm143
    %v146 = vsub.s32 %v25, 12
    %v147 = vsub.s32 %v22, 3
    %v148 = vsub.s32 %v109, 3
    %vm149 = vcmp.eq.s32.totalorder %v146, %v147
    %vm150 = vcmp.eq.s32.totalorder %v146, %v148
    %vm151 = vmand %vm144, %vm149
    %vm152 = vmand %vm145, %vm150
    %v153 = vsel %vm151, 1.0, %v138
    %v154 = vsel %vm152, 1.0, %v139
    %v155 = vsel %vm142, 1, 0
    %v156 = vsel %vm143, 1, 0
    %v157 = vcvt.s32.f32 %v155
    %v158 = vcvt.s32.f32 %v156
    %v159 = vmul.f32 %v153, %v108
    %v160 = vmul.f32 %v154, %v108
    %v161 = vsel %vm83, %v159, 0.0
    %162 = vadd.xlane.f32.xlu0 %v161
    %v163 = vpop.xlane.xlu0 %162
    %v164 = vsel %vm83, %v160, 0.0
    %165 = vadd.xlane.f32.xlu0 %v164
    %v166 = vpop.xlane.xlu0 %165
    %v167 = vmul.f32 %v163, %v163
    %v168 = vmul.f32 %v166, %v166
    %v169 = vsub.f32 0.0, %v167
    %v170 = vsub.f32 0.0, %v168
    %v171 = vrcp.pop 2.0
    %v172 = vmul.f32 2.0, %v171
    %v173 = vsub.f32 1.0, %v172
    %v174 = vmul.f32 %v171, %v173
    %v175 = vadd.f32 %v171, %v174
    %vm176 = vweird.f32 %v171
    %v177 = vsel %vm176, %v171, %v175
    %v178 = vmul.f32 %v169, %v177
    %v179 = vmul.f32 %v170, %v177
    %v180 = vmul.f32 %v178, 1.442695
    %v181 = vpow.pop %v180
    %v182 = vmul.f32 %v179, 1.442695
    %v183 = vpow.pop %v182
    %v184 = vsub.f32 1.0, %v181
    %v185 = vsub.f32 1.0, %v183
    %v186 = vand.u32 2147483647, %v163
    %v187 = vand.u32 2147483647, %v166
    %v188 = vmul.f32 %v186, 0.1
    %v189 = vmul.f32 %v187, 0.1
    %v190 = vadd.f32 %v184, %v188
    %v191 = vadd.f32 %v185, %v189
    %v192 = vmul.f32 %v190, %v157
    %v193 = vmul.f32 %v191, %v158
    %vm194 = vcmask 7168
    %v195 = vsel %vm194, %v192, 0.0
    %v196 = vsel %vm194, %v193, 0.0
    %v197 = vadd.f32 %v195, %v196
    %198 = vadd.xlane.f32.xlu0 %v197
    %v199 = vpop.xlane.xlu0 %198
    %v200 = vrot.slane %v199, 4
    %v201 = vadd.f32 %v199, %v200
    %v202 = vrot.slane %v201, 2
    %v203 = vadd.f32 %v201, %v202
    %v204 = vrot.slane %v203, 1
    %v205 = vadd.f32 %v203, %v204
    %s206 = vtos %v205
    %v207 = vstv %s206
    %v208 = vmul.f32 %v207, 0.05
    %v209 = vadd.f32 %v74, %v208
    %v210 = vadd.f32 %v209, 0.0
    %s211 = vtos %v210
    %s212 = scalar_lea.smem [#allocation3], 0
    %213 = sst [smem:[%s212]] %s211
    // Predicated region
    $region18: #{grouped_lasso_penalty.1} parent=1 // pred_check
      _
    $region19: #{grouped_lasso_penalty.1} parent=1 // pred_check_branch
      %215 = sbr.rel (0) target = $region21
    $region20: #{grouped_lasso_penalty.1} parent=1 // pred_region
      %217 = vsyncadd [#allocation4], 0
      %s219 = sshll.u32 %s4, 4
      %s220 = int_to_ptr.hbm [resolvable:$true] %s219
      %222 = dma.smem_to_hbm [#allocation3], 16, %s220, [#allocation4]
    $region21: #{grouped_lasso_penalty.1} parent=1 // pred_fallthru
      _
    // Predicated region
    $region22: #{grouped_lasso_penalty.1} parent=1 // pred_check
      _
    $region23: #{grouped_lasso_penalty.1} parent=1 // pred_check_branch
      %224 = sbr.rel (0) target = $region25
    $region24: #{grouped_lasso_penalty.1} parent=1 // pred_region
      %226 = dma.done [#allocation4], 16
    $region25: #{grouped_lasso_penalty.1} parent=1 // pred_fallthru
      _
    %227 = sfence
    %228 = vsyncpa [#allocation4], 1

</llo_original>
